<compile_context>
chip_gen: v7x
topology: tpu7x:2x2x1
jax: 0.10.0
libtpu: 0.0.40
codegen_flags: <defaults>
</compile_context>

<pallas_src>
import jax
import jax.numpy as jnp
from jax.experimental import pallas as pl
from jax.experimental.pallas import tpu as pltpu


def _transition_kernel(x_ref, scale_ref, shift_ref, w_ref, b_ref, o_ref):
    # x_ref:     (1, C_in, ts)
    # scale_ref: (C_in, 1)      shift_ref: (C_in, 1)
    # w_ref:     (C_out, C_in)  b_ref:     (C_out, 1)
    # o_ref:     (1, C_out, ts)
    z = x_ref[0] * scale_ref[...] + shift_ref[...]            # fused BatchNorm
    z = jnp.where(z > 0, z, jnp.exp(jnp.minimum(z, 0.0)) - 1.0)   # ELU (alpha=1)
    y = jnp.dot(w_ref[...], z, preferred_element_type=jnp.float32)  # 1x1 conv on MXU
    o_ref[0] = (y + b_ref[...]).astype(o_ref.dtype)


def transition_layer(x, gamma, beta, running_mean, running_var,
                     conv_w, conv_b, *, eps=1e-5):
    """Pallas implementation of TransitionLayer.forward (eval-mode BN)."""
    B, C_in, H, W = x.shape
    C_out = conv_w.shape[0]
    assert conv_w.shape == (C_out, C_in, 1, 1)
    S = H * W

    # Fold BatchNorm (running stats) into per-channel scale & shift.
    scale = (gamma / jnp.sqrt(running_var + eps)).astype(jnp.float32)
    shift = (beta - running_mean * scale).astype(jnp.float32)
    scale = scale.reshape(C_in, 1)
    shift = shift.reshape(C_in, 1)

    w2 = conv_w.reshape(C_out, C_in).astype(jnp.float32)
    b2 = conv_b.reshape(C_out, 1).astype(jnp.float32)

    # Pure reshape of contiguous NCHW — no extra HBM pass.
    x3 = x.reshape(B, C_in, S)

    # Lane tile over the flattened spatial axis: full-S blocks when small
    # (always legal: equals the full dim), otherwise 2048-wide 128-aligned
    # tiles (a ragged tail only affects the lane axis -> masked stores; the
    # contraction dim C_in stays exact).
    ts = S if S <= 2048 else 2048
    grid = (B, pl.cdiv(S, ts))

    itemsize = jnp.dtype(x.dtype).itemsize
    cost = pl.CostEstimate(
        flops=2 * B * S * C_in * C_out,
        transcendentals=B * S * C_in,
        bytes_accessed=(B * S * (C_in + C_out) + C_in * C_out + 3 * C_in + C_out)
        * itemsize,
    )

    out = pl.pallas_call(
        _transition_kernel,
        out_shape=jax.ShapeDtypeStruct((B, C_out, S), x.dtype),
        grid_spec=pltpu.PrefetchScalarGridSpec(
            num_scalar_prefetch=0,
            grid=grid,
            in_specs=[
                pl.BlockSpec((1, C_in, ts), lambda b, s: (b, 0, s)),
                pl.BlockSpec((C_in, 1), lambda b, s: (0, 0)),
                pl.BlockSpec((C_in, 1), lambda b, s: (0, 0)),
                pl.BlockSpec((C_out, C_in), lambda b, s: (0, 0)),
                pl.BlockSpec((C_out, 1), lambda b, s: (0, 0)),
            ],
            out_specs=pl.BlockSpec((1, C_out, ts), lambda b, s: (b, 0, s)),
        ),
        compiler_params=pltpu.CompilerParams(
            dimension_semantics=("parallel", "parallel")
        ),
        cost_estimate=cost,
    )(x3, scale, shift, w2, b2)

    return out.reshape(B, C_out, H, W)


def transition_layer_reference(x, gamma, beta, running_mean, running_var,
                               conv_w, conv_b, *, eps=1e-5):
    """Pure-JAX reference mirroring the PyTorch forward (eval-mode BN)."""
    C_out, C_in = conv_w.shape[0], conv_w.shape[1]
    z = (x - running_mean[None, :, None, None]) / jnp.sqrt(
        running_var[None, :, None, None] + eps)
    z = z * gamma[None, :, None, None] + beta[None, :, None, None]
    z = jnp.where(z > 0, z, jnp.expm1(z))                     # ELU (alpha=1)
    y = jnp.einsum("oc,bchw->bohw", conv_w.reshape(C_out, C_in), z)
    return y + conv_b[None, :, None, None]


if __name__ == "__main__":
    # Small shapes consistent with the module: NCHW feature map, 1x1 conv.
    B, C_in, C_out, H, W = 2, 8, 4, 16, 16
    key = jax.random.PRNGKey(0)
    kx, kg, kb, km, kv, kw, kc = jax.random.split(key, 7)

    x = jax.random.normal(kx, (B, C_in, H, W), dtype=jnp.float32)
    gamma = 1.0 + 0.1 * jax.random.normal(kg, (C_in,), dtype=jnp.float32)
    beta = 0.1 * jax.random.normal(kb, (C_in,), dtype=jnp.float32)
    running_mean = 0.1 * jax.random.normal(km, (C_in,), dtype=jnp.float32)
    running_var = jax.random.uniform(kv, (C_in,), dtype=jnp.float32,
                                     minval=0.5, maxval=1.5)
    conv_w = jax.random.normal(kw, (C_out, C_in, 1, 1), dtype=jnp.float32)
    conv_w = conv_w / jnp.sqrt(jnp.float32(C_in))
    conv_b = 0.1 * jax.random.normal(kc, (C_out,), dtype=jnp.float32)

    y = transition_layer(x, gamma, beta, running_mean, running_var, conv_w, conv_b)
    jax.block_until_ready(y)

    y_ref = transition_layer_reference(x, gamma, beta, running_mean, running_var,
                                       conv_w, conv_b)
    assert y.shape == (B, C_out, H, W)
    assert jnp.allclose(y, y_ref, atol=2e-3, rtol=2e-3), float(
        jnp.max(jnp.abs(y - y_ref)))

    print("KERNEL_OK")
</pallas_src>

<mosaic_0001>
module attributes {stable_mosaic.version = 11 : i64} {
  func.func @_transition_kernel(%arg0: i32, %arg1: i32, %arg2: memref<1x8x256xf32, #tpu.memory_space<vmem>>, %arg3: memref<8x1xf32, #tpu.memory_space<vmem>>, %arg4: memref<8x1xf32, #tpu.memory_space<vmem>>, %arg5: memref<4x8xf32, #tpu.memory_space<vmem>>, %arg6: memref<4x1xf32, #tpu.memory_space<vmem>>, %arg7: memref<1x4x256xf32, #tpu.memory_space<vmem>>) attributes {dimension_semantics = [#tpu.dimension_semantics<parallel>, #tpu.dimension_semantics<parallel>], iteration_bounds = array<i64: 2, 1>, scalar_prefetch = 0 : i64, scratch_operands = 0 : i64, tpu.core_type = #tpu.core_type<tc>, window_params = [{transform_indices = @transform_0, window_bounds = array<i64: 1, 8, 256>}, {pipeline_mode = #tpu.pipeline_mode<synchronous>, transform_indices = @transform_1, window_bounds = array<i64: 8, 1>}, {pipeline_mode = #tpu.pipeline_mode<synchronous>, transform_indices = @transform_2, window_bounds = array<i64: 8, 1>}, {pipeline_mode = #tpu.pipeline_mode<synchronous>, transform_indices = @transform_3, window_bounds = array<i64: 4, 8>}, {pipeline_mode = #tpu.pipeline_mode<synchronous>, transform_indices = @transform_4, window_bounds = array<i64: 4, 1>}, {transform_indices = @transform_5, window_bounds = array<i64: 1, 4, 256>}]} {
    %c0 = arith.constant 0 : index
    %c0_0 = arith.constant 0 : index
    %c0_1 = arith.constant 0 : index
    %0 = vector.load %arg2[%c0, %c0_0, %c0_1] : memref<1x8x256xf32, #tpu.memory_space<vmem>>, vector<1x8x256xf32>
    %1 = vector.shape_cast %0 : vector<1x8x256xf32> to vector<8x256xf32>
    %c0_2 = arith.constant 0 : index
    %c0_3 = arith.constant 0 : index
    %2 = vector.load %arg3[%c0_2, %c0_3] : memref<8x1xf32, #tpu.memory_space<vmem>>, vector<8x1xf32>
    %3 = vector.broadcast %2 : vector<8x1xf32> to vector<8x256xf32>
    %4 = arith.mulf %1, %3 : vector<8x256xf32>
    %c0_4 = arith.constant 0 : index
    %c0_5 = arith.constant 0 : index
    %5 = vector.load %arg4[%c0_4, %c0_5] : memref<8x1xf32, #tpu.memory_space<vmem>>, vector<8x1xf32>
    %6 = vector.broadcast %5 : vector<8x1xf32> to vector<8x256xf32>
    %7 = arith.addf %4, %6 : vector<8x256xf32>
    %cst = arith.constant 0.000000e+00 : f32
    %8 = vector.broadcast %cst : f32 to vector<8x256xf32>
    %9 = arith.cmpf ogt, %7, %8 : vector<8x256xf32>
    %cst_6 = arith.constant 0.000000e+00 : f32
    %10 = vector.broadcast %cst_6 : f32 to vector<8x256xf32>
    %11 = arith.minimumf %7, %10 : vector<8x256xf32>
    %12 = math.exp %11 : vector<8x256xf32>
    %cst_7 = arith.constant 1.000000e+00 : f32
    %13 = vector.broadcast %cst_7 : f32 to vector<8x256xf32>
    %14 = arith.subf %12, %13 : vector<8x256xf32>
    %15 = arith.select %9, %7, %14 : vector<8x256xi1>, vector<8x256xf32>
    %c0_8 = arith.constant 0 : index
    %c0_9 = arith.constant 0 : index
    %16 = vector.load %arg5[%c0_8, %c0_9] : memref<4x8xf32, #tpu.memory_space<vmem>>, vector<4x8xf32>
    %cst_10 = arith.constant dense<0.000000e+00> : vector<4x256xf32>
    %17 = tpu.matmul %16, %15, %cst_10 {dimension_numbers = #tpu.dot_dimension_numbers<[1], [0], [0], [1], [0, 0, 1, 1], [], []>} : vector<4x8xf32>, vector<8x256xf32>, vector<4x256xf32> -> vector<4x256xf32>
    %c0_11 = arith.constant 0 : index
    %c0_12 = arith.constant 0 : index
    %18 = vector.load %arg6[%c0_11, %c0_12] : memref<4x1xf32, #tpu.memory_space<vmem>>, vector<4x1xf32>
    %19 = vector.broadcast %18 : vector<4x1xf32> to vector<4x256xf32>
    %20 = arith.addf %17, %19 : vector<4x256xf32>
    %c0_13 = arith.constant 0 : index
    %c0_14 = arith.constant 0 : index
    %c0_15 = arith.constant 0 : index
    %21 = vector.load %arg7[%c0_13, %c0_14, %c0_15] : memref<1x4x256xf32, #tpu.memory_space<vmem>>, vector<1x4x256xf32>
    %22 = vector.shape_cast %21 : vector<1x4x256xf32> to vector<4x256xf32>
    %23 = vector.shape_cast %20 : vector<4x256xf32> to vector<1x4x256xf32>
    tpu.vector_store %arg7[%c0_13, %c0_14, %c0_15], %23 {strides = array<i32>} : memref<1x4x256xf32, #tpu.memory_space<vmem>>, vector<1x4x256xf32>,
    return
  }
  func.func @transform_0(%arg0: i32, %arg1: i32) -> (i32, i32, i32) {
    %c0_i32 = arith.constant 0 : i32
    %c0_i32_0 = arith.constant 0 : i32
    return %arg0, %c0_i32, %arg1 : i32, i32, i32
  }
  func.func @transform_1(%arg0: i32, %arg1: i32) -> (i32, i32) {
    %c0_i32 = arith.constant 0 : i32
    %c0_i32_0 = arith.constant 0 : i32
    %c0_i32_1 = arith.constant 0 : i32
    return %c0_i32, %c0_i32_0 : i32, i32
  }
  func.func @transform_2(%arg0: i32, %arg1: i32) -> (i32, i32) {
    %c0_i32 = arith.constant 0 : i32
    %c0_i32_0 = arith.constant 0 : i32
    %c0_i32_1 = arith.constant 0 : i32
    return %c0_i32, %c0_i32_0 : i32, i32
  }
  func.func @transform_3(%arg0: i32, %arg1: i32) -> (i32, i32) {
    %c0_i32 = arith.constant 0 : i32
    %c0_i32_0 = arith.constant 0 : i32
    %c0_i32_1 = arith.constant 0 : i32
    return %c0_i32, %c0_i32_0 : i32, i32
  }
  func.func @transform_4(%arg0: i32, %arg1: i32) -> (i32, i32) {
    %c0_i32 = arith.constant 0 : i32
    %c0_i32_0 = arith.constant 0 : i32
    %c0_i32_1 = arith.constant 0 : i32
    return %c0_i32, %c0_i32_0 : i32, i32
  }
  func.func @transform_5(%arg0: i32, %arg1: i32) -> (i32, i32, i32) {
    %c0_i32 = arith.constant 0 : i32
    %c0_i32_0 = arith.constant 0 : i32
    return %arg0, %c0_i32, %arg1 : i32, i32, i32
  }
}

</mosaic_0001>

<llo_original>
// kernel: tpu_custom_call.1
$region0: #{tpu_custom_call.1}
  #allocation0 [shape = 'u32[]', space=smem, size = 0x4, offset = 0x4, fixed_abs, tag = 'smem constant byte address 0x4 - core index']
  #allocation1 [shape = 'u32[144,128]{1,0:T(1,128)}', space=vmem, size = 0x12000, scoped, tag = 'internal scratch']
  %s0 = inlined_call_operand.hbm [shape: f32[2,8,256], index: 0, kind: input, shape index: {}]
  %s1 = inlined_call_operand.vmem [shape: f32[8,1], index: 1, kind: input, shape index: {}]
  %s2 = inlined_call_operand.vmem [shape: f32[8,1], index: 2, kind: input, shape index: {}]
  %s3 = inlined_call_operand.vmem [shape: f32[4,8], index: 3, kind: input, shape index: {}]
  %s4 = inlined_call_operand.vmem [shape: f32[4,1], index: 4, kind: input, shape index: {}]
  %s5 = inlined_call_operand.hbm [shape: f32[2,4,256], index: 5, kind: output, shape index: {}]
  %s6 = sld [smem:[#allocation0]]
  $region57: #{tpu_custom_call.1} parent=0
    _
  %s8 = ssub.s32 1, %s6
  %s9 = scalar_select 0, %s8, %s6
  $region1: #{tpu_custom_call.1} parent=0
    #allocation2 [shape = 'u8[16384]{0}', space=vmem, size = 0x4000, scoped, tag = 'input window, operand 0']
    #allocation3 [shape = 's32[2]{0}', space=sflag, size = 0x8, scoped, tag = 'scoped memory for tpu_custom_call.1']
    #allocation4 [shape = 's32[2]{0}', space=sflag, size = 0x8, scoped, tag = 'scoped memory for tpu_custom_call.1']
    #allocation5 [shape = 'u8[8192]{0}', space=vmem, size = 0x2000, scoped, tag = 'output window, operand 0']
    %10 = vsyncpa [#allocation3], 0
    %s11 = scalar_lea.sflag [#allocation3], 1
    %12 = vsyncpa %s11, 0
    %13 = vsyncpa [#allocation4], 0
    %s14 = scalar_lea.sflag [#allocation4], 1
    %15 = vsyncpa %s14, 0
    loop: start=0, step=1, limit=4
    $region2: #{tpu_custom_call.1} parent=1 // loop_pre_header
      _
    $region3: #{tpu_custom_call.1} parent=1 // loop_header
      %s17 = sphi 0, %s21
      %p18 = scmp.ge.s32.totalorder %s17, 4
      %s24 = sphi 0, %s36
      %s25 = sphi 0, %s32
      %s26 = sphi 0, %s24
      %s27 = sphi 0, %s25
      %s28 = sphi 0, %s26
      %s29 = sphi 0, %s27
      %s41 = sphi 0, %s43
      %s44 = sphi 0, %s41
      %s45 = sphi 0, %s44
      %s61 = sphi 0, %s45
      %s65 = sphi 0, %s65
      %s67 = sphi 0, %s65
      %s68 = sphi 0, %s67
      %s82 = sphi 0, %s68
      %s86 = sphi 0, %s86
      %s88 = sphi 0, %s86
      %s89 = sphi 0, %s88
      %s103 = sphi 0, %s89
      %s107 = sphi 0, %s107
      %s109 = sphi 0, %s107
      %s110 = sphi 0, %s109
      %s124 = sphi 0, %s110
      %s128 = sphi 0, %s128
      %s130 = sphi 0, %s128
      %s131 = sphi 0, %s130
      %s145 = sphi 0, %s131
      %s153 = sphi 0, %s155
      %s156 = sphi 0, %s153
      %s157 = sphi 0, %s156
      %s173 = sphi 0, %s157
    $region4: #{tpu_custom_call.1} parent=1 // loop_header_branch
      %20 = sbr.rel (%p18) target = $region8
    $region5: #{tpu_custom_call.1} parent=1 // loop_body
      %s22 = ssub.s32 %s17, 1
      %s23 = ssub.s32 %s17, 2
      %s30 = sadd.s32 1, %s25
      %p31 = scmp.ge.s32.totalorder %s30, 1
      %s32 = scalar_select %p31, 0, %s30
      %s33 = sadd.s32 1, %s24
      %s34 = scalar_select %p31, %s33, %s24
      %p35 = scmp.ge.s32.totalorder %s34, 2
      %s36 = scalar_select %p35, 0, %s34
      %s37 = ssub.s32 %s24, %s36
      %s38 = ssub.s32 %s25, %s32
      %s39 = sor.u32 %s37, %s38
      %p40 = scmp.eq.s32.totalorder %s39, 0
      %s42 = sadd.s32 %s41, 1
      %s43 = scalar_select %p40, %s41, %s42
      %p46 = pneg %p40
      %p47 = scmp.eq.s32.totalorder %s17, 1
      %p48 = por %p46, %p47
      %p49 = scmp.ne.s32.totalorder %s41, %s44
      %p50 = scmp.eq.s32.totalorder %s17, 0
      %p51 = por %p49, %p50
      %p52 = scmp.ne.s32.totalorder %s41, %s44
      %p53 = scmp.eq.s32.totalorder %s22, 1
      %p54 = por %p52, %p53
      %p55 = scmp.ne.s32.totalorder %s44, %s45
      %p56 = scmp.eq.s32.totalorder %s22, 0
      %p57 = por %p55, %p56
      %p58 = scmp.ne.s32.totalorder %s44, %s45
      %p59 = scmp.eq.s32.totalorder %s23, 1
      %p60 = por %p58, %p59
      %p62 = scmp.ne.s32.totalorder %s45, %s61
      %p63 = scmp.eq.s32.totalorder %s23, 0
      %p64 = por %p62, %p63
      %s66 = sadd.s32 %s65, 1
      %p69 = scmp.eq.s32.totalorder %s17, 1
      %p70 = scmp.ne.s32.totalorder %s65, %s67
      %p71 = scmp.eq.s32.totalorder %s17, 0
      %p72 = por %p70, %p71
      %p73 = scmp.ne.s32.totalorder %s65, %s67
      %p74 = scmp.eq.s32.totalorder %s22, 1
      %p75 = por %p73, %p74
      %p76 = scmp.ne.s32.totalorder %s67, %s68
      %p77 = scmp.eq.s32.totalorder %s22, 0
      %p78 = por %p76, %p77
      %p79 = scmp.ne.s32.totalorder %s67, %s68
      %p80 = scmp.eq.s32.totalorder %s23, 1
      %p81 = por %p79, %p80
      %p83 = scmp.ne.s32.totalorder %s68, %s82
      %p84 = scmp.eq.s32.totalorder %s23, 0
      %p85 = por %p83, %p84
      %s87 = sadd.s32 %s86, 1
      %p90 = scmp.eq.s32.totalorder %s17, 1
      %p91 = scmp.ne.s32.totalorder %s86, %s88
      %p92 = scmp.eq.s32.totalorder %s17, 0
      %p93 = por %p91, %p92
      %p94 = scmp.ne.s32.totalorder %s86, %s88
      %p95 = scmp.eq.s32.totalorder %s22, 1
      %p96 = por %p94, %p95
      %p97 = scmp.ne.s32.totalorder %s88, %s89
      %p98 = scmp.eq.s32.totalorder %s22, 0
      %p99 = por %p97, %p98
      %p100 = scmp.ne.s32.totalorder %s88, %s89
      %p101 = scmp.eq.s32.totalorder %s23, 1
      %p102 = por %p100, %p101
      %p104 = scmp.ne.s32.totalorder %s89, %s103
      %p105 = scmp.eq.s32.totalorder %s23, 0
      %p106 = por %p104, %p105
      %s108 = sadd.s32 %s107, 1
      %p111 = scmp.eq.s32.totalorder %s17, 1
      %p112 = scmp.ne.s32.totalorder %s107, %s109
      %p113 = scmp.eq.s32.totalorder %s17, 0
      %p114 = por %p112, %p113
      %p115 = scmp.ne.s32.totalorder %s107, %s109
      %p116 = scmp.eq.s32.totalorder %s22, 1
      %p117 = por %p115, %p116
      %p118 = scmp.ne.s32.totalorder %s109, %s110
      %p119 = scmp.eq.s32.totalorder %s22, 0
      %p120 = por %p118, %p119
      %p121 = scmp.ne.s32.totalorder %s109, %s110
      %p122 = scmp.eq.s32.totalorder %s23, 1
      %p123 = por %p121, %p122
      %p125 = scmp.ne.s32.totalorder %s110, %s124
      %p126 = scmp.eq.s32.totalorder %s23, 0
      %p127 = por %p125, %p126
      %s129 = sadd.s32 %s128, 1
      %p132 = scmp.eq.s32.totalorder %s17, 1
      %p133 = scmp.ne.s32.totalorder %s128, %s130
      %p134 = scmp.eq.s32.totalorder %s17, 0
      %p135 = por %p133, %p134
      %p136 = scmp.ne.s32.totalorder %s128, %s130
      %p137 = scmp.eq.s32.totalorder %s22, 1
      %p138 = por %p136, %p137
      %p139 = scmp.ne.s32.totalorder %s130, %s131
      %p140 = scmp.eq.s32.totalorder %s22, 0
      %p141 = por %p139, %p140
      %p142 = scmp.ne.s32.totalorder %s130, %s131
      %p143 = scmp.eq.s32.totalorder %s23, 1
      %p144 = por %p142, %p143
      %p146 = scmp.ne.s32.totalorder %s131, %s145
      %p147 = scmp.eq.s32.totalorder %s23, 0
      %p148 = por %p146, %p147
      %s149 = ssub.s32 %s24, %s36
      %s150 = ssub.s32 %s25, %s32
      %s151 = sor.u32 %s149, %s150
      %p152 = scmp.eq.s32.totalorder %s151, 0
      %s154 = sadd.s32 %s153, 1
      %s155 = scalar_select %p152, %s153, %s154
      %p158 = pneg %p152
      %p159 = scmp.eq.s32.totalorder %s17, 1
      %p160 = por %p158, %p159
      %p161 = scmp.ne.s32.totalorder %s153, %s156
      %p162 = scmp.eq.s32.totalorder %s17, 0
      %p163 = por %p161, %p162
      %p164 = scmp.ne.s32.totalorder %s153, %s156
      %p165 = scmp.eq.s32.totalorder %s22, 1
      %p166 = por %p164, %p165
      %p167 = scmp.ne.s32.totalorder %s156, %s157
      %p168 = scmp.eq.s32.totalorder %s22, 0
      %p169 = por %p167, %p168
      %p170 = scmp.ne.s32.totalorder %s156, %s157
      %p171 = scmp.eq.s32.totalorder %s23, 1
      %p172 = por %p170, %p171
      %p174 = scmp.ne.s32.totalorder %s157, %s173
      %p175 = scmp.eq.s32.totalorder %s23, 0
      %p176 = por %p174, %p175
      %p177 = scmp.le.s32.totalorder 1, %s17
      %p178 = scmp.lt.s32.totalorder %s17, 3
      %p179 = pnand %p177, %p178
      %p180 = pneg %p179
      // Predicated region
      $region9: #{tpu_custom_call.1} parent=5 // pred_check
        _
      $region10: #{tpu_custom_call.1} parent=5 // pred_check_branch
        %182 = sbr.rel (%p179) target = $region12
      $region11: #{tpu_custom_call.1} parent=5 // pred_region
        %s183 = ssub.s32 %s17, 1
        // Predicated region
        $region13: #{tpu_custom_call.1} parent=11 // pred_check
          %p184 = pneg %p78
        $region14: #{tpu_custom_call.1} parent=11 // pred_check_branch
          %186 = sbr.rel (%p184) target = $region16
        $region15: #{tpu_custom_call.1} parent=11 // pred_region
          _
        $region16: #{tpu_custom_call.1} parent=11 // pred_fallthru
          _
        // Predicated region
        $region17: #{tpu_custom_call.1} parent=11 // pred_check
          %p187 = pneg %p99
        $region18: #{tpu_custom_call.1} parent=11 // pred_check_branch
          %189 = sbr.rel (%p187) target = $region20
        $region19: #{tpu_custom_call.1} parent=11 // pred_region
          _
        $region20: #{tpu_custom_call.1} parent=11 // pred_fallthru
          _
        // Predicated region
        $region21: #{tpu_custom_call.1} parent=11 // pred_check
          %p190 = pneg %p120
        $region22: #{tpu_custom_call.1} parent=11 // pred_check_branch
          %192 = sbr.rel (%p190) target = $region24
        $region23: #{tpu_custom_call.1} parent=11 // pred_region
          _
        $region24: #{tpu_custom_call.1} parent=11 // pred_fallthru
          _
        // Predicated region
        $region25: #{tpu_custom_call.1} parent=11 // pred_check
          %p193 = pneg %p141
        $region26: #{tpu_custom_call.1} parent=11 // pred_check_branch
          %195 = sbr.rel (%p193) target = $region28
        $region27: #{tpu_custom_call.1} parent=11 // pred_region
          _
        $region28: #{tpu_custom_call.1} parent=11 // pred_fallthru
          _
      $region12: #{tpu_custom_call.1} parent=5 // pred_fallthru
        _
      %p196 = scmp.lt.s32.totalorder %s17, 2
      // Predicated region
      $region29: #{tpu_custom_call.1} parent=5 // pred_check
        %p197 = pneg %p196
      $region30: #{tpu_custom_call.1} parent=5 // pred_check_branch
        %199 = sbr.rel (%p197) target = $region32
      $region31: #{tpu_custom_call.1} parent=5 // pred_region
        // Predicated region
        $region33: #{tpu_custom_call.1} parent=31 // pred_check
          %p200 = pneg %p51
        $region34: #{tpu_custom_call.1} parent=31 // pred_check_branch
          %202 = sbr.rel (%p200) target = $region36
        $region35: #{tpu_custom_call.1} parent=31 // pred_region
          %s203 = sand.u32 %s41, 1
          %s204 = scalar_lea.sflag [#allocation3], %s203
          %s205 = sand.u32 %s41, 1
          %s206 = smul.addr %s205, 16
          %s207 = scalar_lea.vmem [#allocation2], %s206
          %s208 = smul.u32 2, %s25
          %s210 = ssub.s32 256, 256
          %211 = vsyncadd %s204, %s210
          %s212 = smul.addr %s24, 2
          %s213 = sadd.s32 %s208, %s212
          %s214 = smul.addr %s213, 128
          %s215 = scalar_lea.hbm %s0, %s214
          %s217 = sshll.u32 %s207, 4
          %s218 = int_to_ptr.vmem [resolvable:$true] %s217
          %220 = dma.hbm_to_vmem [thread:$0]  %s215, 256, %s218, %s204
        $region36: #{tpu_custom_call.1} parent=31 // pred_fallthru
          _
      $region32: #{tpu_custom_call.1} parent=5 // pred_fallthru
        _
      %p221 = scmp.le.s32.totalorder 1, %s17
      %p222 = scmp.lt.s32.totalorder %s17, 3
      %p223 = pnand %p221, %p222
      %p224 = pneg %p223
      // Predicated region
      $region37: #{tpu_custom_call.1} parent=5 // pred_check
        _
      $region38: #{tpu_custom_call.1} parent=5 // pred_check_branch
        %226 = sbr.rel (%p223) target = $region40
      $region39: #{tpu_custom_call.1} parent=5 // pred_region
        %s227 = ssub.s32 %s17, 1
        %s228 = sand.u32 %s44, 1
        %s229 = scalar_lea.sflag [#allocation3], %s228
        %s230 = sand.u32 %s44, 1
        %s231 = smul.addr %s230, 16
        %s232 = scalar_lea.vmem [#allocation2], %s231
        // Predicated region
        $region41: #{tpu_custom_call.1} parent=39 // pred_check
          %p233 = pneg %p57
        $region42: #{tpu_custom_call.1} parent=39 // pred_check_branch
          %235 = sbr.rel (%p233) target = $region44
        $region43: #{tpu_custom_call.1} parent=39 // pred_region
          %236 = dma.done %s229, 256
        $region44: #{tpu_custom_call.1} parent=39 // pred_fallthru
          _
        %s237 = sand.u32 %s44, 1
        %s238 = scalar_lea.sflag [#allocation3], %s237
        %s239 = sand.u32 %s44, 1
        %s240 = smul.addr %s239, 16
        %s241 = scalar_lea.vmem [#allocation2], %s240
        %p242 = pneg %p57
        %p243 = pneg %p54
        %p244 = pneg %p78
        %p245 = pneg %p75
        %p246 = pneg %p99
        %p247 = pneg %p96
        %p248 = pneg %p120
        %p249 = pneg %p117
        %p250 = pneg %p141
        %p251 = pneg %p138
        %p252 = pneg %p169
        %p253 = pneg %p166
        %s254 = sand.u32 %s156, 1
        %s255 = scalar_lea.sflag [#allocation4], %s254
        %s256 = sand.u32 %s156, 1
        %s257 = smul.addr %s256, 8
        %s258 = scalar_lea.vmem [#allocation5], %s257
        %s259 = smul.u32 2, %s27
        %s260 = smul.u32 2, %s27
        %v261 = vld [vmem:[%s232] sm:$0xff]
        %v262 = vld [vmem:[%s232 + $0x8] sm:$0xff]
        %v263 = vld [vmem:[%s1] sm:$0xff]
        %265 = vset.pattern.permute.xlu0 0
        %266 = vperm.xlu0 %265, %v263
        %v267 = vpop.permute.xlu0 %266
        %v269 = vmul.f32 %v261, %v267
        %v270 = vmul.f32 %v262, %v267
        %v271 = vld [vmem:[%s2] sm:$0xff]
        %273 = vset.pattern.permute.xlu0 0
        %274 = vperm.xlu0 %273, %v271
        %v275 = vpop.permute.xlu0 %274
        %v277 = vadd.f32 %v269, %v275
        %v278 = vadd.f32 %v270, %v275
        %vm279 = vcmp.gt.f32.partialorder %v277, 0.0
        %vm280 = vcmp.gt.f32.partialorder %v278, 0.0
        %v281 = vmin.f32 %v277, 0.0
        %v282 = vmin.f32 %v278, 0.0
        %v283 = vmul.f32 %v281, 1.442695
        %v284 = vpow.pop %v283
        %v285 = vmul.f32 %v282, 1.442695
        %v286 = vpow.pop %v285
        %v287 = vsub.f32 %v284, 1.0
        %v288 = vsub.f32 %v286, 1.0
        %v289 = vsel %vm279, %v277, %v287
        %v290 = vsel %vm280, %v278, %v288
        %v291 = vld [vmem:[%s3] sm:$0xf]
        %v292 = vld [vmem:[%s4] sm:$0xf]
        %294 = vset.pattern.permute.xlu0 0
        %295 = vperm.xlu0 %294, %v292
        %v296 = vpop.permute.xlu0 %295
        %vm298 = vcmask 64512
        %v300 = vsel %vm298, %v291, 0
        %302 = vmatprep.subr.mxu0 %v290
        %303 = vmatpush1.msra.mxu0 %v289
        %304 = vmatprep.subr.mxu0 0.0
        %305 = vmatpush1.msra.mxu0 0.0
        %306 = vmatprep.subr.mxu0 0.0
        %307 = vmatpush1.msra.mxu0 0.0
        %308 = vmatprep.subr.mxu0 0.0
        %309 = vmatpush1.msra.mxu0 0.0
        %310 = vmatprep.subr.mxu0 0.0
        %311 = vmatpush1.msra.mxu0 0.0
        %312 = vmatprep.subr.mxu0 0.0
        %313 = vmatpush1.msra.mxu0 0.0
        %314 = vmatprep.subr.mxu0 0.0
        %315 = vmatpush1.msra.mxu0 0.0
        %316 = vmatprep.subr.mxu0 0.0
        %317 = vmatpush1.msra.mxu0 0.0
        %318 = vmatprep.subr.mxu0 0.0
        %319 = vmatpush1.msra.mxu0 0.0
        %320 = vmatprep.subr.mxu0 0.0
        %321 = vmatpush1.msra.mxu0 0.0
        %322 = vmatprep.subr.mxu0 0.0
        %323 = vmatpush1.msra.mxu0 0.0
        %324 = vmatprep.subr.mxu0 0.0
        %325 = vmatpush1.msra.mxu0 0.0
        %326 = vmatprep.subr.mxu0 0.0
        %327 = vmatpush1.msra.mxu0 0.0
        %328 = vmatprep.subr.mxu0 0.0
        %329 = vmatpush1.msra.mxu0 0.0
        %330 = vmatprep.subr.mxu0 0.0
        %331 = vmatpush1.msra.mxu0 0.0
        %332 = vmatprep.subr.mxu0 0.0
        %333 = vmatpush1.msra.mxu0 0.0
        %334 = vmatprep.subr.mxu0 0.0
        %335 = vmatpush1.msra.mxu0 0.0
        %336 = vmatprep.subr.mxu0 0.0
        %337 = vmatpush1.msra.mxu0 0.0
        %338 = vmatprep.subr.mxu0 0.0
        %339 = vmatpush1.msra.mxu0 0.0
        %340 = vmatprep.subr.mxu0 0.0
        %341 = vmatpush1.msra.mxu0 0.0
        %342 = vmatprep.subr.mxu0 0.0
        %343 = vmatpush1.msra.mxu0 0.0
        %344 = vmatprep.subr.mxu0 0.0
        %345 = vmatpush1.msra.mxu0 0.0
        %346 = vmatprep.subr.mxu0 0.0
        %347 = vmatpush1.msra.mxu0 0.0
        %348 = vmatprep.subr.mxu0 0.0
        %349 = vmatpush1.msra.mxu0 0.0
        %350 = vmatprep.subr.mxu0 0.0
        %351 = vmatpush1.msra.mxu0 0.0
        %352 = vmatprep.subr.mxu0 0.0
        %353 = vmatpush1.msra.mxu0 0.0
        %354 = vmatprep.subr.mxu0 0.0
        %355 = vmatpush1.msra.mxu0 0.0
        %356 = vmatprep.subr.mxu0 0.0
        %357 = vmatpush1.msra.mxu0 0.0
        %358 = vmatprep.subr.mxu0 0.0
        %359 = vmatpush1.msra.mxu0 0.0
        %360 = vmatprep.subr.mxu0 0.0
        %361 = vmatpush1.msra.mxu0 0.0
        %362 = vmatprep.subr.mxu0 0.0
        %363 = vmatpush1.msra.mxu0 0.0
        %364 = vmatprep.subr.mxu0 0.0
        %365 = vmatpush1.msra.mxu0 0.0
        %366 = vmatprep.mubr.f32.mxu0 0.0
        %367 = vmatmul.mubr.f32.gmra.mrb[0].mxu0 %v300
        %v368 = vpop.f32.mrb[0].mxu0
        %v369 = vadd.f32 %v296, %v368
        %v370 = vpop.f32.mrb[0].mxu0
        %v371 = vadd.f32 %v296, %v370
        %372 = vdwg.mxu0
        %v375 = vcombine.low %v369, %v371
        %377 = vst [vmem:[%s258] sm:$0xff] %v375
        %s378 = sand.u32 %s156, 1
        %s379 = scalar_lea.sflag [#allocation4], %s378
        %s380 = sand.u32 %s156, 1
        %s381 = smul.addr %s380, 8
        %s382 = scalar_lea.vmem [#allocation5], %s381
        // Predicated region
        $region45: #{tpu_custom_call.1} parent=39 // pred_check
          %p383 = pneg %p166
        $region46: #{tpu_custom_call.1} parent=39 // pred_check_branch
          %385 = sbr.rel (%p383) target = $region48
        $region47: #{tpu_custom_call.1} parent=39 // pred_region
          %s386 = smul.u32 2, %s27
          %s388 = ssub.s32 128, 128
          %389 = vsyncadd %s379, %s388
          %s390 = smul.addr %s26, 2
          %s391 = sadd.s32 %s386, %s390
          %s392 = smul.addr %s391, 64
          %s393 = scalar_lea.hbm %s5, %s392
          %s395 = sshll.u32 %s382, 4
          %s396 = int_to_ptr.vmem [resolvable:$true] %s395
          %398 = dma.vmem_to_hbm [thread:$0]  %s396, 128, %s393, %s379
        $region48: #{tpu_custom_call.1} parent=39 // pred_fallthru
          _
      $region40: #{tpu_custom_call.1} parent=5 // pred_fallthru
        _
      %p399 = scmp.le.s32.totalorder 2, %s17
      // Predicated region
      $region49: #{tpu_custom_call.1} parent=5 // pred_check
        %p400 = pneg %p399
      $region50: #{tpu_custom_call.1} parent=5 // pred_check_branch
        %402 = sbr.rel (%p400) target = $region52
      $region51: #{tpu_custom_call.1} parent=5 // pred_region
        %s403 = ssub.s32 %s17, 2
        // Predicated region
        $region53: #{tpu_custom_call.1} parent=51 // pred_check
          %p404 = pneg %p172
        $region54: #{tpu_custom_call.1} parent=51 // pred_check_branch
          %406 = sbr.rel (%p404) target = $region56
        $region55: #{tpu_custom_call.1} parent=51 // pred_region
          %s407 = sand.u32 %s157, 1
          %s408 = scalar_lea.sflag [#allocation4], %s407
          %s409 = sand.u32 %s157, 1
          %s410 = smul.addr %s409, 8
          %s411 = scalar_lea.vmem [#allocation5], %s410
          %412 = dma.done %s408, 128
        $region56: #{tpu_custom_call.1} parent=51 // pred_fallthru
          _
      $region52: #{tpu_custom_call.1} parent=5 // pred_fallthru
        _
    $region6: #{tpu_custom_call.1} parent=1 // loop_footer
      %s21 = sadd.s32 1, %s17
    $region7: #{tpu_custom_call.1} parent=1 // loop_footer_branch
      %16 = sbr.rel target = $region3
    $region8: #{tpu_custom_call.1} parent=1 // loop_exit
      _
    %413 = vsyncpa [#allocation3], 1
    %s414 = scalar_lea.sflag [#allocation3], 1
    %415 = vsyncpa %s414, 1
    %416 = vsyncpa [#allocation4], 1
    %s417 = scalar_lea.sflag [#allocation4], 1
    %418 = vsyncpa %s417, 1

</llo_original>
